<compile_context>
chip_gen: v5e
topology: v5e:2x2
jax: 0.10.0
libtpu: 0.0.40
codegen_flags: <defaults>
</compile_context>

<pallas_src>
import jax
import jax.numpy as jnp
from jax.experimental import pallas as pl
from jax.experimental.pallas import tpu as pltpu


# -------------------------- kernel --------------------------

def _time_embedding_kernel(x_ref, w1_ref, b1_ref, w2_ref, b2_ref, o_ref):
    # x_ref : (tm, n_emb)   f32
    # w1_ref: (n_emb, hid)  bf16  (pre-transposed W1^T)   b1_ref: (1, hid)   f32
    # w2_ref: (hid, n_out)  bf16  (pre-transposed W2^T)   b2_ref: (1, n_out) f32
    # o_ref : (tm, n_out)   f32
    x = x_ref[...].astype(jnp.bfloat16)
    h = jnp.dot(x, w1_ref[...], preferred_element_type=jnp.float32) + b1_ref[...]
    h = h * jax.nn.sigmoid(h)                      # SiLU in f32 (EUP slot)
    o_ref[...] = (jnp.dot(h.astype(jnp.bfloat16), w2_ref[...],
                          preferred_element_type=jnp.float32) + b2_ref[...])


# -------------------------- wrapper (params preprocessed once) --------------------------

def make_time_embedding(w1, b1, w2, b2, *, max_tile=256, weight_dtype=jnp.bfloat16):
    """Build a forward(x) callable for TimeEmbedding.

    PyTorch Linear layouts:
        w1: (4*n_emb, n_emb), b1: (4*n_emb,), w2: (n_emb, 4*n_emb), b2: (n_emb,)

    Weights are transposed + cast to bf16 ONCE here (not per call), so the
    per-call path contains no standalone XLA transpose ops.
    """
    hid, n_emb = w1.shape
    n_out = w2.shape[0]

    w1t = jnp.asarray(w1.T, dtype=weight_dtype)            # (n_emb, hid)
    w2t = jnp.asarray(w2.T, dtype=weight_dtype)            # (hid, n_out)
    b1r = jnp.asarray(b1, dtype=jnp.float32).reshape(1, hid)
    b2r = jnp.asarray(b2, dtype=jnp.float32).reshape(1, n_out)

    def forward(x):
        n = x.shape[0]
        # Large, sublane-aligned batch tile; pad the batch instead of using
        # a ragged / un-tiled fallback block.
        n8 = ((n + 7) // 8) * 8
        tm = min(max_tile, n8)
        n_pad = ((n8 + tm - 1) // tm) * tm
        x_p = x if n_pad == n else jnp.pad(x, ((0, n_pad - n), (0, 0)))
        grid = (n_pad // tm,)

        # Shard the batch across TensorCores only when each core gets a full
        # tile (>= max_tile rows); otherwise keep it on a single core so the
        # resident weights are not DMA'd twice.
        semantics = ("parallel",) if tm >= max_tile else ("arbitrary",)

        # Weight/bias blocks have a constant index_map -> single buffer.
        const_1buf = pl.Buffered(1)

        # NOTE: when scaling n_emb to real SD sizes, re-derive tm against the
        # v7x VMEM budget (64 MiB physical / 32 MiB default scoped) and raise
        # vmem_limit_bytes via pltpu.CompilerParams only with headroom.
        out = pl.pallas_call(
            _time_embedding_kernel,
            out_shape=jax.ShapeDtypeStruct((n_pad, n_out), jnp.float32),
            grid=grid,
            in_specs=[
                pl.BlockSpec((tm, n_emb), lambda i: (i, 0)),
                pl.BlockSpec((n_emb, hid), lambda i: (0, 0),
                             pipeline_mode=const_1buf),
                pl.BlockSpec((1, hid), lambda i: (0, 0),
                             pipeline_mode=const_1buf),
                pl.BlockSpec((hid, n_out), lambda i: (0, 0),
                             pipeline_mode=const_1buf),
                pl.BlockSpec((1, n_out), lambda i: (0, 0),
                             pipeline_mode=const_1buf),
            ],
            out_specs=pl.BlockSpec((tm, n_out), lambda i: (i, 0)),
            compiler_params=pltpu.CompilerParams(
                dimension_semantics=semantics),
        )(x_p, w1t, b1r, w2t, b2r)

        return out[:n] if n_pad != n else out

    return forward


# -------------------------- pure-JAX reference --------------------------

def ref_forward(x, w1, b1, w2, b2):
    h = x @ w1.T + b1
    h = h * jax.nn.sigmoid(h)
    return h @ w2.T + b2


# -------------------------- main --------------------------

if __name__ == "__main__":
    N, N_EMB = 16, 128                 # lane-dense: n_emb=128, hidden=512
    HID = 4 * N_EMB
    N_OUT = N_EMB                      # linear_2: 4*n_emb -> n_emb

    key = jax.random.PRNGKey(0)
    ks = jax.random.split(key, 5)
    x = jax.random.normal(ks[0], (N, N_EMB), jnp.float32)
    w1 = 0.05 * jax.random.normal(ks[1], (HID, N_EMB), jnp.float32)
    b1 = 0.05 * jax.random.normal(ks[2], (HID,), jnp.float32)
    w2 = 0.05 * jax.random.normal(ks[3], (N_OUT, HID), jnp.float32)
    b2 = 0.05 * jax.random.normal(ks[4], (N_OUT,), jnp.float32)

    fwd = make_time_embedding(w1, b1, w2, b2)

    out = jax.block_until_ready(fwd(x))
    assert out.shape == (N, N_OUT)

    ref = ref_forward(x, w1, b1, w2, b2)
    # Tolerance reflects bf16 weight storage + default MXU precision with
    # f32 accumulation (documented trade-off from the review).
    max_err = float(jnp.max(jnp.abs(out - ref)))
    if max_err > 3e-2:
        raise RuntimeError(f"Pallas/reference mismatch: max abs err = {max_err}")

    # Exercise the padding path (batch not a multiple of 8).
    x_odd = jax.random.normal(ks[0], (12, N_EMB), jnp.float32)
    out_odd = jax.block_until_ready(fwd(x_odd))
    assert out_odd.shape == (12, N_OUT)
    max_err_odd = float(jnp.max(jnp.abs(out_odd - ref_forward(x_odd, w1, b1, w2, b2))))
    if max_err_odd > 3e-2:
        raise RuntimeError(f"Pallas/reference mismatch (padded): max abs err = {max_err_odd}")

    print("KERNEL_OK")
</pallas_src>

<mosaic_0001>
module attributes {stable_mosaic.version = 11 : i64} {
  func.func @_time_embedding_kernel(%arg0: i32, %arg1: memref<16x128xf32, #tpu.memory_space<vmem>>, %arg2: memref<128x512xbf16, #tpu.memory_space<vmem>>, %arg3: memref<1x512xf32, #tpu.memory_space<vmem>>, %arg4: memref<512x128xbf16, #tpu.memory_space<vmem>>, %arg5: memref<1x128xf32, #tpu.memory_space<vmem>>, %arg6: memref<16x128xf32, #tpu.memory_space<vmem>>) attributes {dimension_semantics = [#tpu.dimension_semantics<arbitrary>], iteration_bounds = array<i64: 1>, scalar_prefetch = 0 : i64, scratch_operands = 0 : i64, tpu.core_type = #tpu.core_type<tc>, window_params = [{transform_indices = @transform_0, window_bounds = array<i64: 16, 128>}, {pipeline_mode = #tpu.pipeline_mode<synchronous>, transform_indices = @transform_1, window_bounds = array<i64: 128, 512>}, {pipeline_mode = #tpu.pipeline_mode<synchronous>, transform_indices = @transform_2, window_bounds = array<i64: 1, 512>}, {pipeline_mode = #tpu.pipeline_mode<synchronous>, transform_indices = @transform_3, window_bounds = array<i64: 512, 128>}, {pipeline_mode = #tpu.pipeline_mode<synchronous>, transform_indices = @transform_4, window_bounds = array<i64: 1, 128>}, {transform_indices = @transform_5, window_bounds = array<i64: 16, 128>}]} {
    %c0 = arith.constant 0 : index
    %c0_0 = arith.constant 0 : index
    %0 = vector.load %arg1[%c0, %c0_0] : memref<16x128xf32, #tpu.memory_space<vmem>>, vector<16x128xf32>
    %1 = arith.truncf %0 : vector<16x128xf32> to vector<16x128xbf16>
    %c0_1 = arith.constant 0 : index
    %c0_2 = arith.constant 0 : index
    %2 = vector.load %arg2[%c0_1, %c0_2] : memref<128x512xbf16, #tpu.memory_space<vmem>>, vector<128x512xbf16>
    %cst = arith.constant dense<0.000000e+00> : vector<16x512xf32>
    %3 = tpu.matmul %1, %2, %cst {dimension_numbers = #tpu.dot_dimension_numbers<[1], [0], [0], [1], [0, 0, 1, 1], [], []>} : vector<16x128xbf16>, vector<128x512xbf16>, vector<16x512xf32> -> vector<16x512xf32>
    %c0_3 = arith.constant 0 : index
    %c0_4 = arith.constant 0 : index
    %4 = vector.load %arg3[%c0_3, %c0_4] : memref<1x512xf32, #tpu.memory_space<vmem>>, vector<1x512xf32>
    %5 = vector.broadcast %4 : vector<1x512xf32> to vector<16x512xf32>
    %6 = arith.addf %3, %5 : vector<16x512xf32>
    %7 = arith.negf %6 : vector<16x512xf32>
    %8 = math.exp %7 : vector<16x512xf32>
    %cst_5 = arith.constant 1.000000e+00 : f32
    %9 = vector.broadcast %cst_5 : f32 to vector<16x512xf32>
    %10 = arith.addf %9, %8 : vector<16x512xf32>
    %11 = arith.divf %9, %10 : vector<16x512xf32>
    %12 = arith.mulf %6, %11 : vector<16x512xf32>
    %13 = arith.truncf %12 : vector<16x512xf32> to vector<16x512xbf16>
    %c0_6 = arith.constant 0 : index
    %c0_7 = arith.constant 0 : index
    %14 = vector.load %arg4[%c0_6, %c0_7] : memref<512x128xbf16, #tpu.memory_space<vmem>>, vector<512x128xbf16>
    %cst_8 = arith.constant dense<0.000000e+00> : vector<16x128xf32>
    %15 = tpu.matmul %13, %14, %cst_8 {dimension_numbers = #tpu.dot_dimension_numbers<[1], [0], [0], [1], [0, 0, 1, 1], [], []>} : vector<16x512xbf16>, vector<512x128xbf16>, vector<16x128xf32> -> vector<16x128xf32>
    %c0_9 = arith.constant 0 : index
    %c0_10 = arith.constant 0 : index
    %16 = vector.load %arg5[%c0_9, %c0_10] : memref<1x128xf32, #tpu.memory_space<vmem>>, vector<1x128xf32>
    %17 = vector.broadcast %16 : vector<1x128xf32> to vector<16x128xf32>
    %18 = arith.addf %15, %17 : vector<16x128xf32>
    %c0_11 = arith.constant 0 : index
    %c0_12 = arith.constant 0 : index
    %19 = vector.load %arg6[%c0_11, %c0_12] : memref<16x128xf32, #tpu.memory_space<vmem>>, vector<16x128xf32>
    tpu.vector_store %arg6[%c0_11, %c0_12], %18 {strides = array<i32>} : memref<16x128xf32, #tpu.memory_space<vmem>>, vector<16x128xf32>,
    return
  }
  func.func @transform_0(%arg0: i32) -> (i32, i32) {
    %c0_i32 = arith.constant 0 : i32
    %c0_i32_0 = arith.constant 0 : i32
    return %arg0, %c0_i32 : i32, i32
  }
  func.func @transform_1(%arg0: i32) -> (i32, i32) {
    %c0_i32 = arith.constant 0 : i32
    %c0_i32_0 = arith.constant 0 : i32
    %c0_i32_1 = arith.constant 0 : i32
    return %c0_i32, %c0_i32_0 : i32, i32
  }
  func.func @transform_2(%arg0: i32) -> (i32, i32) {
    %c0_i32 = arith.constant 0 : i32
    %c0_i32_0 = arith.constant 0 : i32
    %c0_i32_1 = arith.constant 0 : i32
    return %c0_i32, %c0_i32_0 : i32, i32
  }
  func.func @transform_3(%arg0: i32) -> (i32, i32) {
    %c0_i32 = arith.constant 0 : i32
    %c0_i32_0 = arith.constant 0 : i32
    %c0_i32_1 = arith.constant 0 : i32
    return %c0_i32, %c0_i32_0 : i32, i32
  }
  func.func @transform_4(%arg0: i32) -> (i32, i32) {
    %c0_i32 = arith.constant 0 : i32
    %c0_i32_0 = arith.constant 0 : i32
    %c0_i32_1 = arith.constant 0 : i32
    return %c0_i32, %c0_i32_0 : i32, i32
  }
  func.func @transform_5(%arg0: i32) -> (i32, i32) {
    %c0_i32 = arith.constant 0 : i32
    %c0_i32_0 = arith.constant 0 : i32
    return %arg0, %c0_i32 : i32, i32
  }
}

</mosaic_0001>

<llo_original>
// kernel: tpu_custom_call.1
$region0: #{tpu_custom_call.1}
  #allocation0 [shape = 'u32[]', space=smem, size = 0x4, offset = 0x4, fixed_abs, tag = 'smem constant byte address 0x4 - core index']
  #allocation1 [shape = 'u32[72,128]{1,0:T(1,128)}', space=vmem, size = 0x9000, scoped, tag = 'internal scratch']
  %s0 = inlined_call_operand.hbm [shape: f32[16,128], index: 0, kind: input, shape index: {}]
  %s1 = inlined_call_operand.hbm [shape: bf16[128,512], index: 1, kind: input, shape index: {}]
  %s2 = inlined_call_operand.hbm [shape: f32[1,512], index: 2, kind: input, shape index: {}]
  %s3 = inlined_call_operand.hbm [shape: bf16[512,128], index: 3, kind: input, shape index: {}]
  %s4 = inlined_call_operand.vmem [shape: f32[1,128], index: 4, kind: input, shape index: {}]
  %s5 = inlined_call_operand.hbm [shape: f32[16,128], index: 5, kind: output, shape index: {}]
  %s6 = sld [smem:[#allocation0]]
  $region46: #{tpu_custom_call.1} parent=0
    _
  %s8 = ssub.s32 1, %s6
  %s9 = scalar_select 0, %s8, %s6
  $region1: #{tpu_custom_call.1} parent=0
    #allocation2 [shape = 'u8[8192]{0}', space=vmem, size = 0x2000, scoped, tag = 'input window, operand 0, single buffered']
    #allocation3 [shape = 's32[1]{0}', space=sflag, size = 0x4, scoped, tag = 'scoped memory for tpu_custom_call.1']
    #allocation4 [shape = 's32[1]{0}', space=sflag, size = 0x4, scoped, tag = 'scoped memory for tpu_custom_call.1']
    #allocation5 [shape = 'u8[131072]{0}', space=vmem, size = 0x20000, scoped, tag = 'input window, operand 1, single buffered']
    #allocation6 [shape = 's32[1]{0}', space=sflag, size = 0x4, scoped, tag = 'scoped memory for tpu_custom_call.1']
    #allocation7 [shape = 'u8[2048]{0}', space=vmem, size = 0x800, scoped, tag = 'input window, operand 2, single buffered']
    #allocation8 [shape = 'u8[131072]{0}', space=vmem, size = 0x20000, scoped, tag = 'input window, operand 3, single buffered']
    #allocation9 [shape = 's32[1]{0}', space=sflag, size = 0x4, scoped, tag = 'scoped memory for tpu_custom_call.1']
    #allocation10 [shape = 'u8[8192]{0}', space=vmem, size = 0x2000, scoped, tag = 'output window, operand 0, single buffered']
    %10 = vsyncpa [#allocation3], 0
    %11 = vsyncpa [#allocation6], 0
    %12 = vsyncpa [#allocation9], 0
    %13 = vsyncpa [#allocation4], 0
    // Predicated region
    $region2: #{tpu_custom_call.1} parent=1 // pred_check
      _
    $region3: #{tpu_custom_call.1} parent=1 // pred_check_branch
      %15 = sbr.rel (0) target = $region5
    $region4: #{tpu_custom_call.1} parent=1 // pred_region
      %17 = vsyncadd [#allocation3], 0
      %s18 = sshll.u32 %s0, 4
      %s19 = int_to_ptr.hbm [resolvable:$true] %s18
      %s20 = sshll.u32 [#allocation2], 4
      %s21 = int_to_ptr.vmem [resolvable:$true] %s20
      %26 = dma.hbm_to_vmem [thread:$0]  %s19, 256, %s21, [#allocation3], 128, 128, 8
    $region5: #{tpu_custom_call.1} parent=1 // pred_fallthru
      _
    // Predicated region
    $region6: #{tpu_custom_call.1} parent=1 // pred_check
      _
    $region7: #{tpu_custom_call.1} parent=1 // pred_check_branch
      %28 = sbr.rel (0) target = $region9
    $region8: #{tpu_custom_call.1} parent=1 // pred_region
      %30 = vsyncadd [#allocation6], 0
      %s31 = sshll.u32 %s1, 4
      %s32 = int_to_ptr.hbm [resolvable:$true] %s31
      %s33 = sshll.u32 [#allocation5], 4
      %s34 = int_to_ptr.vmem [resolvable:$true] %s33
      %39 = dma.hbm_to_vmem [thread:$0]  %s32, 4096, %s34, [#allocation6], 256, 256, 16
    $region9: #{tpu_custom_call.1} parent=1 // pred_fallthru
      _
    // Predicated region
    $region10: #{tpu_custom_call.1} parent=1 // pred_check
      _
    $region11: #{tpu_custom_call.1} parent=1 // pred_check_branch
      %41 = sbr.rel (0) target = $region13
    $region12: #{tpu_custom_call.1} parent=1 // pred_region
      %43 = vsyncadd [#allocation6], 0
      %s45 = sshll.u32 %s2, 4
      %s46 = int_to_ptr.hbm [resolvable:$true] %s45
      %s47 = sshll.u32 [#allocation7], 4
      %s48 = int_to_ptr.vmem [resolvable:$true] %s47
      %50 = dma.hbm_to_vmem [thread:$0]  %s46, 64, %s48, [#allocation6]
    $region13: #{tpu_custom_call.1} parent=1 // pred_fallthru
      _
    // Predicated region
    $region14: #{tpu_custom_call.1} parent=1 // pred_check
      _
    $region15: #{tpu_custom_call.1} parent=1 // pred_check_branch
      %52 = sbr.rel (0) target = $region17
    $region16: #{tpu_custom_call.1} parent=1 // pred_region
      %54 = vsyncadd [#allocation9], 0
      %s55 = sshll.u32 %s3, 4
      %s56 = int_to_ptr.hbm [resolvable:$true] %s55
      %s57 = sshll.u32 [#allocation8], 4
      %s58 = int_to_ptr.vmem [resolvable:$true] %s57
      %63 = dma.hbm_to_vmem [thread:$0]  %s56, 4096, %s58, [#allocation9], 64, 64, 4
    $region17: #{tpu_custom_call.1} parent=1 // pred_fallthru
      _
    // Predicated region
    $region18: #{tpu_custom_call.1} parent=1 // pred_check
      _
    $region19: #{tpu_custom_call.1} parent=1 // pred_check_branch
      %65 = sbr.rel (0) target = $region21
    $region20: #{tpu_custom_call.1} parent=1 // pred_region
      _
    $region21: #{tpu_custom_call.1} parent=1 // pred_fallthru
      _
    // Predicated region
    $region22: #{tpu_custom_call.1} parent=1 // pred_check
      _
    $region23: #{tpu_custom_call.1} parent=1 // pred_check_branch
      %67 = sbr.rel (0) target = $region25
    $region24: #{tpu_custom_call.1} parent=1 // pred_region
      %69 = dma.done [#allocation3], 256
    $region25: #{tpu_custom_call.1} parent=1 // pred_fallthru
      _
    // Predicated region
    $region26: #{tpu_custom_call.1} parent=1 // pred_check
      _
    $region27: #{tpu_custom_call.1} parent=1 // pred_check_branch
      %71 = sbr.rel (0) target = $region29
    $region28: #{tpu_custom_call.1} parent=1 // pred_region
      %73 = dma.done [#allocation6], 4096
    $region29: #{tpu_custom_call.1} parent=1 // pred_fallthru
      _
    // Predicated region
    $region30: #{tpu_custom_call.1} parent=1 // pred_check
      _
    $region31: #{tpu_custom_call.1} parent=1 // pred_check_branch
      %75 = sbr.rel (0) target = $region33
    $region32: #{tpu_custom_call.1} parent=1 // pred_region
      %77 = dma.done [#allocation6], 64
    $region33: #{tpu_custom_call.1} parent=1 // pred_fallthru
      _
    // Predicated region
    $region34: #{tpu_custom_call.1} parent=1 // pred_check
      _
    $region35: #{tpu_custom_call.1} parent=1 // pred_check_branch
      %79 = sbr.rel (0) target = $region37
    $region36: #{tpu_custom_call.1} parent=1 // pred_region
      %81 = dma.done [#allocation9], 4096
    $region37: #{tpu_custom_call.1} parent=1 // pred_fallthru
      _
    %v82 = vld [vmem:[#allocation2] sm:$0xff]
    %v83 = vld [vmem:[#allocation2 + $0x8] sm:$0xff]
    %v84 = vpack.c.bf16 %v83, %v82
    %v85 = vld [vmem:[#allocation5] sm:$0xff]
    %v86 = vld [vmem:[#allocation5 + $0x8] sm:$0xff]
    %v87 = vld [vmem:[#allocation5 + $0x10] sm:$0xff]
    %v88 = vld [vmem:[#allocation5 + $0x18] sm:$0xff]
    %v89 = vld [vmem:[#allocation5 + $0x20] sm:$0xff]
    %v90 = vld [vmem:[#allocation5 + $0x28] sm:$0xff]
    %v91 = vld [vmem:[#allocation5 + $0x30] sm:$0xff]
    %v92 = vld [vmem:[#allocation5 + $0x38] sm:$0xff]
    %v93 = vld [vmem:[#allocation5 + $0x40] sm:$0xff]
    %v94 = vld [vmem:[#allocation5 + $0x48] sm:$0xff]
    %v95 = vld [vmem:[#allocation5 + $0x50] sm:$0xff]
    %v96 = vld [vmem:[#allocation5 + $0x58] sm:$0xff]
    %v97 = vld [vmem:[#allocation5 + $0x60] sm:$0xff]
    %v98 = vld [vmem:[#allocation5 + $0x68] sm:$0xff]
    %v99 = vld [vmem:[#allocation5 + $0x70] sm:$0xff]
    %v100 = vld [vmem:[#allocation5 + $0x78] sm:$0xff]
    %v101 = vld [vmem:[#allocation5 + $0x80] sm:$0xff]
    %v102 = vld [vmem:[#allocation5 + $0x88] sm:$0xff]
    %v103 = vld [vmem:[#allocation5 + $0x90] sm:$0xff]
    %v104 = vld [vmem:[#allocation5 + $0x98] sm:$0xff]
    %v105 = vld [vmem:[#allocation5 + $0xa0] sm:$0xff]
    %v106 = vld [vmem:[#allocation5 + $0xa8] sm:$0xff]
    %v107 = vld [vmem:[#allocation5 + $0xb0] sm:$0xff]
    %v108 = vld [vmem:[#allocation5 + $0xb8] sm:$0xff]
    %v109 = vld [vmem:[#allocation5 + $0xc0] sm:$0xff]
    %v110 = vld [vmem:[#allocation5 + $0xc8] sm:$0xff]
    %v111 = vld [vmem:[#allocation5 + $0xd0] sm:$0xff]
    %v112 = vld [vmem:[#allocation5 + $0xd8] sm:$0xff]
    %v113 = vld [vmem:[#allocation5 + $0xe0] sm:$0xff]
    %v114 = vld [vmem:[#allocation5 + $0xe8] sm:$0xff]
    %v115 = vld [vmem:[#allocation5 + $0xf0] sm:$0xff]
    %v116 = vld [vmem:[#allocation5 + $0xf8] sm:$0xff]
    %v117 = vld [vmem:[#allocation7] sm:$0xf]
    %v119 = vperm.slane %v117, 0
    %v120 = vperm.slane %v117, 1
    %v121 = vperm.slane %v117, 2
    %v122 = vperm.slane %v117, 3
    %v159 = vunpack.c.l.b16 %v85
    %v160 = vunpack.c.h.b16 %v85
    %v161 = vunpack.c.l.b16 %v86
    %v162 = vunpack.c.h.b16 %v86
    %v163 = vunpack.c.l.b16 %v87
    %v164 = vunpack.c.h.b16 %v87
    %v165 = vunpack.c.l.b16 %v88
    %v166 = vunpack.c.h.b16 %v88
    %v167 = vunpack.c.l.b16 %v89
    %v168 = vunpack.c.h.b16 %v89
    %v169 = vunpack.c.l.b16 %v90
    %v170 = vunpack.c.h.b16 %v90
    %v171 = vunpack.c.l.b16 %v91
    %v172 = vunpack.c.h.b16 %v91
    %v173 = vunpack.c.l.b16 %v92
    %v174 = vunpack.c.h.b16 %v92
    %v175 = vunpack.c.l.b16 %v93
    %v176 = vunpack.c.h.b16 %v93
    %v177 = vunpack.c.l.b16 %v94
    %v178 = vunpack.c.h.b16 %v94
    %v179 = vunpack.c.l.b16 %v95
    %v180 = vunpack.c.h.b16 %v95
    %v181 = vunpack.c.l.b16 %v96
    %v182 = vunpack.c.h.b16 %v96
    %v183 = vunpack.c.l.b16 %v97
    %v184 = vunpack.c.h.b16 %v97
    %v185 = vunpack.c.l.b16 %v98
    %v186 = vunpack.c.h.b16 %v98
    %v187 = vunpack.c.l.b16 %v99
    %v188 = vunpack.c.h.b16 %v99
    %v189 = vunpack.c.l.b16 %v100
    %v190 = vunpack.c.h.b16 %v100
    %v191 = vunpack.c.l.b16 %v101
    %v192 = vunpack.c.h.b16 %v101
    %v193 = vunpack.c.l.b16 %v102
    %v194 = vunpack.c.h.b16 %v102
    %v195 = vunpack.c.l.b16 %v103
    %v196 = vunpack.c.h.b16 %v103
    %v197 = vunpack.c.l.b16 %v104
    %v198 = vunpack.c.h.b16 %v104
    %v199 = vunpack.c.l.b16 %v105
    %v200 = vunpack.c.h.b16 %v105
    %v201 = vunpack.c.l.b16 %v106
    %v202 = vunpack.c.h.b16 %v106
    %v203 = vunpack.c.l.b16 %v107
    %v204 = vunpack.c.h.b16 %v107
    %v205 = vunpack.c.l.b16 %v108
    %v206 = vunpack.c.h.b16 %v108
    %v207 = vunpack.c.l.b16 %v109
    %v208 = vunpack.c.h.b16 %v109
    %v209 = vunpack.c.l.b16 %v110
    %v210 = vunpack.c.h.b16 %v110
    %v211 = vunpack.c.l.b16 %v111
    %v212 = vunpack.c.h.b16 %v111
    %v213 = vunpack.c.l.b16 %v112
    %v214 = vunpack.c.h.b16 %v112
    %v215 = vunpack.c.l.b16 %v113
    %v216 = vunpack.c.h.b16 %v113
    %v217 = vunpack.c.l.b16 %v114
    %v218 = vunpack.c.h.b16 %v114
    %v219 = vunpack.c.l.b16 %v115
    %v220 = vunpack.c.h.b16 %v115
    %v221 = vunpack.c.l.b16 %v116
    %v222 = vunpack.c.h.b16 %v116
    %v223 = vpack.c.b16 %v163, %v159
    %v224 = vpack.c.b16 %v164, %v160
    %v225 = vpack.c.b16 %v165, %v161
    %v226 = vpack.c.b16 %v166, %v162
    %v227 = vpack.c.b16 %v171, %v167
    %v228 = vpack.c.b16 %v172, %v168
    %v229 = vpack.c.b16 %v173, %v169
    %v230 = vpack.c.b16 %v174, %v170
    %v231 = vpack.c.b16 %v179, %v175
    %v232 = vpack.c.b16 %v180, %v176
    %v233 = vpack.c.b16 %v181, %v177
    %v234 = vpack.c.b16 %v182, %v178
    %v235 = vpack.c.b16 %v187, %v183
    %v236 = vpack.c.b16 %v188, %v184
    %v237 = vpack.c.b16 %v189, %v185
    %v238 = vpack.c.b16 %v190, %v186
    %v239 = vpack.c.b16 %v195, %v191
    %v240 = vpack.c.b16 %v196, %v192
    %v241 = vpack.c.b16 %v197, %v193
    %v242 = vpack.c.b16 %v198, %v194
    %v243 = vpack.c.b16 %v203, %v199
    %v244 = vpack.c.b16 %v204, %v200
    %v245 = vpack.c.b16 %v205, %v201
    %v246 = vpack.c.b16 %v206, %v202
    %v247 = vpack.c.b16 %v211, %v207
    %v248 = vpack.c.b16 %v212, %v208
    %v249 = vpack.c.b16 %v213, %v209
    %v250 = vpack.c.b16 %v214, %v210
    %v251 = vpack.c.b16 %v219, %v215
    %v252 = vpack.c.b16 %v220, %v216
    %v253 = vpack.c.b16 %v221, %v217
    %v254 = vpack.c.b16 %v222, %v218
    %287 = vmatpush.bf16.msra.mxu0 %v251
    %288 = vmatpush.bf16.msra.mxu0 %v247
    %289 = vmatpush.bf16.msra.mxu0 %v243
    %290 = vmatpush.bf16.msra.mxu0 %v239
    %291 = vmatpush.bf16.msra.mxu0 %v235
    %292 = vmatpush.bf16.msra.mxu0 %v231
    %293 = vmatpush.bf16.msra.mxu0 %v227
    %294 = vmatpush.bf16.msra.mxu0 %v223
    %295 = vmatmul.bf16.gmra.mxu0 %v84
    %v296 = vpop.f32.mrf.mxu0
    %v297 = vadd.f32 %v119, %v296
    %v298 = vpop.f32.mrf.mxu0
    %v299 = vadd.f32 %v119, %v298
    %300 = vdwg.mxu0
    %301 = vmatpush.bf16.msra.mxu0 %v252
    %302 = vmatpush.bf16.msra.mxu0 %v248
    %303 = vmatpush.bf16.msra.mxu0 %v244
    %304 = vmatpush.bf16.msra.mxu0 %v240
    %305 = vmatpush.bf16.msra.mxu0 %v236
    %306 = vmatpush.bf16.msra.mxu0 %v232
    %307 = vmatpush.bf16.msra.mxu0 %v228
    %308 = vmatpush.bf16.msra.mxu0 %v224
    %309 = vmatmul.bf16.gmra.mxu0 %v84
    %v310 = vpop.f32.mrf.mxu0
    %v311 = vadd.f32 %v120, %v310
    %v312 = vpop.f32.mrf.mxu0
    %v313 = vadd.f32 %v120, %v312
    %314 = vdwg.mxu0
    %315 = vmatpush.bf16.msra.mxu0 %v253
    %316 = vmatpush.bf16.msra.mxu0 %v249
    %317 = vmatpush.bf16.msra.mxu0 %v245
    %318 = vmatpush.bf16.msra.mxu0 %v241
    %319 = vmatpush.bf16.msra.mxu0 %v237
    %320 = vmatpush.bf16.msra.mxu0 %v233
    %321 = vmatpush.bf16.msra.mxu0 %v229
    %322 = vmatpush.bf16.msra.mxu0 %v225
    %323 = vmatmul.bf16.gmra.mxu0 %v84
    %v324 = vpop.f32.mrf.mxu0
    %v325 = vadd.f32 %v121, %v324
    %v326 = vpop.f32.mrf.mxu0
    %v327 = vadd.f32 %v121, %v326
    %328 = vdwg.mxu0
    %329 = vmatpush.bf16.msra.mxu0 %v254
    %330 = vmatpush.bf16.msra.mxu0 %v250
    %331 = vmatpush.bf16.msra.mxu0 %v246
    %332 = vmatpush.bf16.msra.mxu0 %v242
    %333 = vmatpush.bf16.msra.mxu0 %v238
    %334 = vmatpush.bf16.msra.mxu0 %v234
    %335 = vmatpush.bf16.msra.mxu0 %v230
    %336 = vmatpush.bf16.msra.mxu0 %v226
    %337 = vmatmul.bf16.gmra.mxu0 %v84
    %v338 = vpop.f32.mrf.mxu0
    %v339 = vadd.f32 %v122, %v338
    %v340 = vpop.f32.mrf.mxu0
    %v341 = vadd.f32 %v122, %v340
    %342 = vdwg.mxu0
    %v343 = vxor.u32 %v297, 2147483648
    %v344 = vxor.u32 %v311, 2147483648
    %v345 = vxor.u32 %v325, 2147483648
    %v346 = vxor.u32 %v339, 2147483648
    %v347 = vxor.u32 %v299, 2147483648
    %v348 = vxor.u32 %v313, 2147483648
    %v349 = vxor.u32 %v327, 2147483648
    %v350 = vxor.u32 %v341, 2147483648
    %v351 = vmul.f32 %v343, 1.442695
    %v352 = vpow.pop %v351
    %v353 = vmul.f32 %v344, 1.442695
    %v354 = vpow.pop %v353
    %v355 = vmul.f32 %v345, 1.442695
    %v356 = vpow.pop %v355
    %v357 = vmul.f32 %v346, 1.442695
    %v358 = vpow.pop %v357
    %v359 = vmul.f32 %v347, 1.442695
    %v360 = vpow.pop %v359
    %v361 = vmul.f32 %v348, 1.442695
    %v362 = vpow.pop %v361
    %v363 = vmul.f32 %v349, 1.442695
    %v364 = vpow.pop %v363
    %v365 = vmul.f32 %v350, 1.442695
    %v366 = vpow.pop %v365
    %v367 = vadd.f32 %v352, 1.0
    %v368 = vadd.f32 %v354, 1.0
    %v369 = vadd.f32 %v356, 1.0
    %v370 = vadd.f32 %v358, 1.0
    %v371 = vadd.f32 %v360, 1.0
    %v372 = vadd.f32 %v362, 1.0
    %v373 = vadd.f32 %v364, 1.0
    %v374 = vadd.f32 %v366, 1.0
    %v375 = vrcp.pop %v367
    %v376 = vmul.f32 %v367, %v375
    %v377 = vsub.f32 1.0, %v376
    %v378 = vmul.f32 %v375, %v377
    %v379 = vadd.f32 %v375, %v378
    %vm380 = vweird.f32 %v367
    %vm381 = vweird.f32 %v375
    %vm382 = vmor %vm380, %vm381
    %v383 = vsel %vm382, %v375, %v379
    %v384 = vand.u32 2147483647, %v367
    %vm385 = vcmp.eq.f32.partialorder %v384, 8.507059e+37
    %v386 = vand.u32 %v367, 2147483648
    %v387 = vor.u32 1.1754944e-38, %v386
    %v388 = vsel %vm385, %v387, %v383
    %v389 = vmul.f32 1.0, %v388
    %v390 = vrcp.pop %v368
    %v391 = vmul.f32 %v368, %v390
    %v392 = vsub.f32 1.0, %v391
    %v393 = vmul.f32 %v390, %v392
    %v394 = vadd.f32 %v390, %v393
    %vm395 = vweird.f32 %v368
    %vm396 = vweird.f32 %v390
    %vm397 = vmor %vm395, %vm396
    %v398 = vsel %vm397, %v390, %v394
    %v399 = vand.u32 2147483647, %v368
    %vm400 = vcmp.eq.f32.partialorder %v399, 8.507059e+37
    %v401 = vand.u32 %v368, 2147483648
    %v402 = vor.u32 1.1754944e-38, %v401
    %v403 = vsel %vm400, %v402, %v398
    %v404 = vmul.f32 1.0, %v403
    %v405 = vrcp.pop %v369
    %v406 = vmul.f32 %v369, %v405
    %v407 = vsub.f32 1.0, %v406
    %v408 = vmul.f32 %v405, %v407
    %v409 = vadd.f32 %v405, %v408
    %vm410 = vweird.f32 %v369
    %vm411 = vweird.f32 %v405
    %vm412 = vmor %vm410, %vm411
    %v413 = vsel %vm412, %v405, %v409
    %v414 = vand.u32 2147483647, %v369
    %vm415 = vcmp.eq.f32.partialorder %v414, 8.507059e+37
    %v416 = vand.u32 %v369, 2147483648
    %v417 = vor.u32 1.1754944e-38, %v416
    %v418 = vsel %vm415, %v417, %v413
    %v419 = vmul.f32 1.0, %v418
    %v420 = vrcp.pop %v370
    %v421 = vmul.f32 %v370, %v420
    %v422 = vsub.f32 1.0, %v421
    %v423 = vmul.f32 %v420, %v422
    %v424 = vadd.f32 %v420, %v423
    %vm425 = vweird.f32 %v370
    %vm426 = vweird.f32 %v420
    %vm427 = vmor %vm425, %vm426
    %v428 = vsel %vm427, %v420, %v424
    %v429 = vand.u32 2147483647, %v370
    %vm430 = vcmp.eq.f32.partialorder %v429, 8.507059e+37
    %v431 = vand.u32 %v370, 2147483648
    %v432 = vor.u32 1.1754944e-38, %v431
    %v433 = vsel %vm430, %v432, %v428
    %v434 = vmul.f32 1.0, %v433
    %v435 = vrcp.pop %v371
    %v436 = vmul.f32 %v371, %v435
    %v437 = vsub.f32 1.0, %v436
    %v438 = vmul.f32 %v435, %v437
    %v439 = vadd.f32 %v435, %v438
    %vm440 = vweird.f32 %v371
    %vm441 = vweird.f32 %v435
    %vm442 = vmor %vm440, %vm441
    %v443 = vsel %vm442, %v435, %v439
    %v444 = vand.u32 2147483647, %v371
    %vm445 = vcmp.eq.f32.partialorder %v444, 8.507059e+37
    %v446 = vand.u32 %v371, 2147483648
    %v447 = vor.u32 1.1754944e-38, %v446
    %v448 = vsel %vm445, %v447, %v443
    %v449 = vmul.f32 1.0, %v448
    %v450 = vrcp.pop %v372
    %v451 = vmul.f32 %v372, %v450
    %v452 = vsub.f32 1.0, %v451
    %v453 = vmul.f32 %v450, %v452
    %v454 = vadd.f32 %v450, %v453
    %vm455 = vweird.f32 %v372
    %vm456 = vweird.f32 %v450
    %vm457 = vmor %vm455, %vm456
    %v458 = vsel %vm457, %v450, %v454
    %v459 = vand.u32 2147483647, %v372
    %vm460 = vcmp.eq.f32.partialorder %v459, 8.507059e+37
    %v461 = vand.u32 %v372, 2147483648
    %v462 = vor.u32 1.1754944e-38, %v461
    %v463 = vsel %vm460, %v462, %v458
    %v464 = vmul.f32 1.0, %v463
    %v465 = vrcp.pop %v373
    %v466 = vmul.f32 %v373, %v465
    %v467 = vsub.f32 1.0, %v466
    %v468 = vmul.f32 %v465, %v467
    %v469 = vadd.f32 %v465, %v468
    %vm470 = vweird.f32 %v373
    %vm471 = vweird.f32 %v465
    %vm472 = vmor %vm470, %vm471
    %v473 = vsel %vm472, %v465, %v469
    %v474 = vand.u32 2147483647, %v373
    %vm475 = vcmp.eq.f32.partialorder %v474, 8.507059e+37
    %v476 = vand.u32 %v373, 2147483648
    %v477 = vor.u32 1.1754944e-38, %v476
    %v478 = vsel %vm475, %v477, %v473
    %v479 = vmul.f32 1.0, %v478
    %v480 = vrcp.pop %v374
    %v481 = vmul.f32 %v374, %v480
    %v482 = vsub.f32 1.0, %v481
    %v483 = vmul.f32 %v480, %v482
    %v484 = vadd.f32 %v480, %v483
    %vm485 = vweird.f32 %v374
    %vm486 = vweird.f32 %v480
    %vm487 = vmor %vm485, %vm486
    %v488 = vsel %vm487, %v480, %v484
    %v489 = vand.u32 2147483647, %v374
    %vm490 = vcmp.eq.f32.partialorder %v489, 8.507059e+37
    %v491 = vand.u32 %v374, 2147483648
    %v492 = vor.u32 1.1754944e-38, %v491
    %v493 = vsel %vm490, %v492, %v488
    %v494 = vmul.f32 1.0, %v493
    %v495 = vmul.f32 %v297, %v389
    %v496 = vmul.f32 %v311, %v404
    %v497 = vmul.f32 %v325, %v419
    %v498 = vmul.f32 %v339, %v434
    %v499 = vmul.f32 %v299, %v449
    %v500 = vmul.f32 %v313, %v464
    %v501 = vmul.f32 %v327, %v479
    %v502 = vmul.f32 %v341, %v494
    %v503 = vpack.c.bf16 %v499, %v495
    %v504 = vpack.c.bf16 %v500, %v496
    %v505 = vpack.c.bf16 %v501, %v497
    %v506 = vpack.c.bf16 %v502, %v498
    %v507 = vld [vmem:[#allocation8] sm:$0xf]
    %v508 = vld [vmem:[#allocation8 + $0x4] sm:$0xf]
    %v509 = vld [vmem:[#allocation8 + $0x8] sm:$0xf]
    %v510 = vld [vmem:[#allocation8 + $0xc] sm:$0xf]
    %v511 = vld [vmem:[#allocation8 + $0x10] sm:$0xf]
    %v512 = vld [vmem:[#allocation8 + $0x14] sm:$0xf]
    %v513 = vld [vmem:[#allocation8 + $0x18] sm:$0xf]
    %v514 = vld [vmem:[#allocation8 + $0x1c] sm:$0xf]
    %v515 = vld [vmem:[#allocation8 + $0x20] sm:$0xf]
    %v516 = vld [vmem:[#allocation8 + $0x24] sm:$0xf]
    %v517 = vld [vmem:[#allocation8 + $0x28] sm:$0xf]
    %v518 = vld [vmem:[#allocation8 + $0x2c] sm:$0xf]
    %v519 = vld [vmem:[#allocation8 + $0x30] sm:$0xf]
    %v520 = vld [vmem:[#allocation8 + $0x34] sm:$0xf]
    %v521 = vld [vmem:[#allocation8 + $0x38] sm:$0xf]
    %v522 = vld [vmem:[#allocation8 + $0x3c] sm:$0xf]
    %v523 = vld [vmem:[#allocation8 + $0x40] sm:$0xf]
    %v524 = vld [vmem:[#allocation8 + $0x44] sm:$0xf]
    %v525 = vld [vmem:[#allocation8 + $0x48] sm:$0xf]
    %v526 = vld [vmem:[#allocation8 + $0x4c] sm:$0xf]
    %v527 = vld [vmem:[#allocation8 + $0x50] sm:$0xf]
    %v528 = vld [vmem:[#allocation8 + $0x54] sm:$0xf]
    %v529 = vld [vmem:[#allocation8 + $0x58] sm:$0xf]
    %v530 = vld [vmem:[#allocation8 + $0x5c] sm:$0xf]
    %v531 = vld [vmem:[#allocation8 + $0x60] sm:$0xf]
    %v532 = vld [vmem:[#allocation8 + $0x64] sm:$0xf]
    %v533 = vld [vmem:[#allocation8 + $0x68] sm:$0xf]
    %v534 = vld [vmem:[#allocation8 + $0x6c] sm:$0xf]
    %v535 = vld [vmem:[#allocation8 + $0x70] sm:$0xf]
    %v536 = vld [vmem:[#allocation8 + $0x74] sm:$0xf]
    %v537 = vld [vmem:[#allocation8 + $0x78] sm:$0xf]
    %v538 = vld [vmem:[#allocation8 + $0x7c] sm:$0xf]
    %v539 = vld [vmem:[#allocation8 + $0x80] sm:$0xf]
    %v540 = vld [vmem:[#allocation8 + $0x84] sm:$0xf]
    %v541 = vld [vmem:[#allocation8 + $0x88] sm:$0xf]
    %v542 = vld [vmem:[#allocation8 + $0x8c] sm:$0xf]
    %v543 = vld [vmem:[#allocation8 + $0x90] sm:$0xf]
    %v544 = vld [vmem:[#allocation8 + $0x94] sm:$0xf]
    %v545 = vld [vmem:[#allocation8 + $0x98] sm:$0xf]
    %v546 = vld [vmem:[#allocation8 + $0x9c] sm:$0xf]
    %v547 = vld [vmem:[#allocation8 + $0xa0] sm:$0xf]
    %v548 = vld [vmem:[#allocation8 + $0xa4] sm:$0xf]
    %v549 = vld [vmem:[#allocation8 + $0xa8] sm:$0xf]
    %v550 = vld [vmem:[#allocation8 + $0xac] sm:$0xf]
    %v551 = vld [vmem:[#allocation8 + $0xb0] sm:$0xf]
    %v552 = vld [vmem:[#allocation8 + $0xb4] sm:$0xf]
    %v553 = vld [vmem:[#allocation8 + $0xb8] sm:$0xf]
    %v554 = vld [vmem:[#allocation8 + $0xbc] sm:$0xf]
    %v555 = vld [vmem:[#allocation8 + $0xc0] sm:$0xf]
    %v556 = vld [vmem:[#allocation8 + $0xc4] sm:$0xf]
    %v557 = vld [vmem:[#allocation8 + $0xc8] sm:$0xf]
    %v558 = vld [vmem:[#allocation8 + $0xcc] sm:$0xf]
    %v559 = vld [vmem:[#allocation8 + $0xd0] sm:$0xf]
    %v560 = vld [vmem:[#allocation8 + $0xd4] sm:$0xf]
    %v561 = vld [vmem:[#allocation8 + $0xd8] sm:$0xf]
    %v562 = vld [vmem:[#allocation8 + $0xdc] sm:$0xf]
    %v563 = vld [vmem:[#allocation8 + $0xe0] sm:$0xf]
    %v564 = vld [vmem:[#allocation8 + $0xe4] sm:$0xf]
    %v565 = vld [vmem:[#allocation8 + $0xe8] sm:$0xf]
    %v566 = vld [vmem:[#allocation8 + $0xec] sm:$0xf]
    %v567 = vld [vmem:[#allocation8 + $0xf0] sm:$0xf]
    %v568 = vld [vmem:[#allocation8 + $0xf4] sm:$0xf]
    %v569 = vld [vmem:[#allocation8 + $0xf8] sm:$0xf]
    %v570 = vld [vmem:[#allocation8 + $0xfc] sm:$0xf]
    %v571 = vld [vmem:[%s4] sm:$0x1]
    %v573 = vperm.slane %v571, 0
    %v639 = vunpack.c.l.b16 %v507
    %v640 = vunpack.c.l.b16 %v508
    %v641 = vunpack.c.l.b16 %v509
    %v642 = vunpack.c.l.b16 %v510
    %v643 = vunpack.c.l.b16 %v511
    %v644 = vunpack.c.l.b16 %v512
    %v645 = vunpack.c.l.b16 %v513
    %v646 = vunpack.c.l.b16 %v514
    %v647 = vunpack.c.l.b16 %v515
    %v648 = vunpack.c.l.b16 %v516
    %v649 = vunpack.c.l.b16 %v517
    %v650 = vunpack.c.l.b16 %v518
    %v651 = vunpack.c.l.b16 %v519
    %v652 = vunpack.c.l.b16 %v520
    %v653 = vunpack.c.l.b16 %v521
    %v654 = vunpack.c.l.b16 %v522
    %v655 = vunpack.c.l.b16 %v523
    %v656 = vunpack.c.l.b16 %v524
    %v657 = vunpack.c.l.b16 %v525
    %v658 = vunpack.c.l.b16 %v526
    %v659 = vunpack.c.l.b16 %v527
    %v660 = vunpack.c.l.b16 %v528
    %v661 = vunpack.c.l.b16 %v529
    %v662 = vunpack.c.l.b16 %v530
    %v663 = vunpack.c.l.b16 %v531
    %v664 = vunpack.c.l.b16 %v532
    %v665 = vunpack.c.l.b16 %v533
    %v666 = vunpack.c.l.b16 %v534
    %v667 = vunpack.c.l.b16 %v535
    %v668 = vunpack.c.l.b16 %v536
    %v669 = vunpack.c.l.b16 %v537
    %v670 = vunpack.c.l.b16 %v538
    %v671 = vunpack.c.l.b16 %v539
    %v672 = vunpack.c.l.b16 %v540
    %v673 = vunpack.c.l.b16 %v541
    %v674 = vunpack.c.l.b16 %v542
    %v675 = vunpack.c.l.b16 %v543
    %v676 = vunpack.c.l.b16 %v544
    %v677 = vunpack.c.l.b16 %v545
    %v678 = vunpack.c.l.b16 %v546
    %v679 = vunpack.c.l.b16 %v547
    %v680 = vunpack.c.l.b16 %v548
    %v681 = vunpack.c.l.b16 %v549
    %v682 = vunpack.c.l.b16 %v550
    %v683 = vunpack.c.l.b16 %v551
    %v684 = vunpack.c.l.b16 %v552
    %v685 = vunpack.c.l.b16 %v553
    %v686 = vunpack.c.l.b16 %v554
    %v687 = vunpack.c.l.b16 %v555
    %v688 = vunpack.c.l.b16 %v556
    %v689 = vunpack.c.l.b16 %v557
    %v690 = vunpack.c.l.b16 %v558
    %v691 = vunpack.c.l.b16 %v559
    %v692 = vunpack.c.l.b16 %v560
    %v693 = vunpack.c.l.b16 %v561
    %v694 = vunpack.c.l.b16 %v562
    %v695 = vunpack.c.l.b16 %v563
    %v696 = vunpack.c.l.b16 %v564
    %v697 = vunpack.c.l.b16 %v565
    %v698 = vunpack.c.l.b16 %v566
    %v699 = vunpack.c.l.b16 %v567
    %v700 = vunpack.c.l.b16 %v568
    %v701 = vunpack.c.l.b16 %v569
    %v702 = vunpack.c.l.b16 %v570
    %v703 = vpack.c.b16 %v640, %v639
    %v704 = vpack.c.b16 %v642, %v641
    %v705 = vpack.c.b16 %v644, %v643
    %v706 = vpack.c.b16 %v646, %v645
    %v707 = vpack.c.b16 %v648, %v647
    %v708 = vpack.c.b16 %v650, %v649
    %v709 = vpack.c.b16 %v652, %v651
    %v710 = vpack.c.b16 %v654, %v653
    %v711 = vpack.c.b16 %v656, %v655
    %v712 = vpack.c.b16 %v658, %v657
    %v713 = vpack.c.b16 %v660, %v659
    %v714 = vpack.c.b16 %v662, %v661
    %v715 = vpack.c.b16 %v664, %v663
    %v716 = vpack.c.b16 %v666, %v665
    %v717 = vpack.c.b16 %v668, %v667
    %v718 = vpack.c.b16 %v670, %v669
    %v719 = vpack.c.b16 %v672, %v671
    %v720 = vpack.c.b16 %v674, %v673
    %v721 = vpack.c.b16 %v676, %v675
    %v722 = vpack.c.b16 %v678, %v677
    %v723 = vpack.c.b16 %v680, %v679
    %v724 = vpack.c.b16 %v682, %v681
    %v725 = vpack.c.b16 %v684, %v683
    %v726 = vpack.c.b16 %v686, %v685
    %v727 = vpack.c.b16 %v688, %v687
    %v728 = vpack.c.b16 %v690, %v689
    %v729 = vpack.c.b16 %v692, %v691
    %v730 = vpack.c.b16 %v694, %v693
    %v731 = vpack.c.b16 %v696, %v695
    %v732 = vpack.c.b16 %v698, %v697
    %v733 = vpack.c.b16 %v700, %v699
    %v734 = vpack.c.b16 %v702, %v701
    %767 = vmatpush.bf16.msra.mxu0 %v710
    %768 = vmatpush.bf16.msra.mxu0 %v709
    %769 = vmatpush.bf16.msra.mxu0 %v708
    %770 = vmatpush.bf16.msra.mxu0 %v707
    %771 = vmatpush.bf16.msra.mxu0 %v706
    %772 = vmatpush.bf16.msra.mxu0 %v705
    %773 = vmatpush.bf16.msra.mxu0 %v704
    %774 = vmatpush.bf16.msra.mxu0 %v703
    %775 = vmatmul.bf16.gmra.mxu0 %v503
    %v776 = vpop.f32.mrf.mxu0
    %v777 = vadd.f32 %v573, %v776
    %v778 = vpop.f32.mrf.mxu0
    %v779 = vadd.f32 %v573, %v778
    %780 = vdwg.mxu0
    %781 = vmatpush.bf16.msra.mxu0 %v718
    %782 = vmatpush.bf16.msra.mxu0 %v717
    %783 = vmatpush.bf16.msra.mxu0 %v716
    %784 = vmatpush.bf16.msra.mxu0 %v715
    %785 = vmatpush.bf16.msra.mxu0 %v714
    %786 = vmatpush.bf16.msra.mxu0 %v713
    %787 = vmatpush.bf16.msra.mxu0 %v712
    %788 = vmatpush.bf16.msra.mxu0 %v711
    %789 = vmatmul.bf16.gmra.mxu0 %v504
    %v790 = vpop.f32.mrf.mxu0
    %v791 = vadd.f32 %v777, %v790
    %v792 = vpop.f32.mrf.mxu0
    %v793 = vadd.f32 %v779, %v792
    %794 = vdwg.mxu0
    %795 = vmatpush.bf16.msra.mxu0 %v726
    %796 = vmatpush.bf16.msra.mxu0 %v725
    %797 = vmatpush.bf16.msra.mxu0 %v724
    %798 = vmatpush.bf16.msra.mxu0 %v723
    %799 = vmatpush.bf16.msra.mxu0 %v722
    %800 = vmatpush.bf16.msra.mxu0 %v721
    %801 = vmatpush.bf16.msra.mxu0 %v720
    %802 = vmatpush.bf16.msra.mxu0 %v719
    %803 = vmatmul.bf16.gmra.mxu0 %v505
    %v804 = vpop.f32.mrf.mxu0
    %v805 = vadd.f32 %v791, %v804
    %v806 = vpop.f32.mrf.mxu0
    %v807 = vadd.f32 %v793, %v806
    %808 = vdwg.mxu0
    %809 = vmatpush.bf16.msra.mxu0 %v734
    %810 = vmatpush.bf16.msra.mxu0 %v733
    %811 = vmatpush.bf16.msra.mxu0 %v732
    %812 = vmatpush.bf16.msra.mxu0 %v731
    %813 = vmatpush.bf16.msra.mxu0 %v730
    %814 = vmatpush.bf16.msra.mxu0 %v729
    %815 = vmatpush.bf16.msra.mxu0 %v728
    %816 = vmatpush.bf16.msra.mxu0 %v727
    %817 = vmatmul.bf16.gmra.mxu0 %v506
    %v818 = vpop.f32.mrf.mxu0
    %v819 = vadd.f32 %v805, %v818
    %v820 = vpop.f32.mrf.mxu0
    %v821 = vadd.f32 %v807, %v820
    %822 = vdwg.mxu0
    %823 = vst [vmem:[#allocation10] sm:$0xff] %v819
    %824 = vst [vmem:[#allocation10 + $0x8] sm:$0xff] %v821
    // Predicated region
    $region38: #{tpu_custom_call.1} parent=1 // pred_check
      _
    $region39: #{tpu_custom_call.1} parent=1 // pred_check_branch
      %826 = sbr.rel (0) target = $region41
    $region40: #{tpu_custom_call.1} parent=1 // pred_region
      %828 = vsyncadd [#allocation4], 0
      %s829 = sshll.u32 [#allocation10], 4
      %s830 = int_to_ptr.vmem [resolvable:$true] %s829
      %s831 = sshll.u32 %s5, 4
      %s832 = int_to_ptr.hbm [resolvable:$true] %s831
      %837 = dma.vmem_to_hbm [thread:$0]  %s830, 256, %s832, [#allocation4], 128, 128, 8
    $region41: #{tpu_custom_call.1} parent=1 // pred_fallthru
      _
    // Predicated region
    $region42: #{tpu_custom_call.1} parent=1 // pred_check
      _
    $region43: #{tpu_custom_call.1} parent=1 // pred_check_branch
      %839 = sbr.rel (0) target = $region45
    $region44: #{tpu_custom_call.1} parent=1 // pred_region
      %841 = dma.done [#allocation4], 256
    $region45: #{tpu_custom_call.1} parent=1 // pred_fallthru
      _
    %842 = vsyncpa [#allocation3], 1
    %843 = vsyncpa [#allocation6], 1
    %844 = vsyncpa [#allocation9], 1
    %845 = vsyncpa [#allocation4], 1

</llo_original>
